<compile_context>
chip_gen: v5e
topology: v5e:2x2
jax: 0.10.0
libtpu: 0.0.40
codegen_flags: <defaults>
</compile_context>

<pallas_src>
import functools

import jax
import jax.numpy as jnp
from jax import lax
from jax.experimental import pallas as pl
from jax.experimental.pallas import tpu as pltpu


# ---------------------------------------------------------------------------
# Hoisted K / V projection kernel (1x1 conv == channel matmul), run once over x.
# ---------------------------------------------------------------------------
def _kv_proj_kernel(x_ref, wk_ref, bk_ref, wv_ref, bv_ref, k_ref, v_ref):
    xb = x_ref[0].astype(jnp.bfloat16)                                   # [C, T]
    k = jnp.dot(wk_ref[...], xb, preferred_element_type=jnp.float32)     # [C8, T]
    v = jnp.dot(wv_ref[...], xb, preferred_element_type=jnp.float32)     # [C, T]
    k_ref[0] = (k + bk_ref[...]).astype(jnp.bfloat16)
    v_ref[0] = (v + bv_ref[...]).astype(jnp.bfloat16)


def _project_kv(x3, wk_b, bk2, wv_b, bv2, tile):
    B, C, HW = x3.shape
    C8 = wk_b.shape[0]
    const = lambda b, i: (0, 0)
    return pl.pallas_call(
        _kv_proj_kernel,
        out_shape=(jax.ShapeDtypeStruct((B, C8, HW), jnp.bfloat16),
                   jax.ShapeDtypeStruct((B, C, HW), jnp.bfloat16)),
        grid=(B, HW // tile),
        in_specs=[
            pl.BlockSpec((1, C, tile), lambda b, i: (b, 0, i)),   # x tile
            pl.BlockSpec((C8, C), const),                         # Wk (bf16)
            pl.BlockSpec((C8, 1), const),                         # bk
            pl.BlockSpec((C, C), const),                          # Wv (bf16)
            pl.BlockSpec((C, 1), const),                          # bv
        ],
        out_specs=(pl.BlockSpec((1, C8, tile), lambda b, i: (b, 0, i)),
                   pl.BlockSpec((1, C, tile), lambda b, i: (b, 0, i))),
        compiler_params=pltpu.CompilerParams(
            dimension_semantics=("parallel", "parallel")),
    )(x3, wk_b, bk2, wv_b, bv2)


# ---------------------------------------------------------------------------
# Attention kernels
# ---------------------------------------------------------------------------
def _attn_kernel_flash(xq_ref, k_ref, v_ref, wq_ref, bq_ref, gamma_ref, o_ref,
                       q_scr, m_scr, l_scr, acc_scr, *, use_bf16_exp):
    # Flash-style online softmax over KV tiles (reduction axis = grid axis 2).
    # xq_ref : (1, C, TQ) f32   query-side x tile (also the residual input)
    # k_ref  : (1, C8, TK) bf16 precomputed key projection tile
    # v_ref  : (1, C, TK) bf16  precomputed value projection tile
    ki = pl.program_id(2)
    nk = pl.num_programs(2)

    @pl.when(ki == 0)
    def _init():
        xq = xq_ref[0].astype(jnp.bfloat16)                            # [C, TQ]
        q = jnp.dot(wq_ref[...], xq, preferred_element_type=jnp.float32)
        q_scr[...] = (q + bq_ref[...]).astype(jnp.bfloat16)            # [C8, TQ]
        m_scr[...] = jnp.full_like(m_scr, -jnp.inf)
        l_scr[...] = jnp.zeros_like(l_scr)
        acc_scr[...] = jnp.zeros_like(acc_scr)

    k = k_ref[0]                                                       # [C8, TK]
    v = v_ref[0]                                                       # [C, TK]

    # energy^T[j, i] = <k_j, q_i>; softmax over j is a sublane reduction and the
    # [1, TQ] running-stat broadcasts stay layout-natural.
    e_t = lax.dot_general(k, q_scr[...],
                          dimension_numbers=(((0,), (0,)), ((), ())),
                          preferred_element_type=jnp.float32)          # [TK, TQ]

    m_prev = m_scr[...]                                                # [1, TQ]
    m_new = jnp.maximum(m_prev, jnp.max(e_t, axis=0, keepdims=True))   # [1, TQ]
    alpha = jnp.exp(m_prev - m_new)                                    # [1, TQ] f32

    if use_bf16_exp:
        # bf16 exp on the EUP (v6e/v7x); p is already bf16 for the PV matmul.
        p = jnp.exp((e_t - m_new).astype(jnp.bfloat16))                # [TK, TQ]
        p_sum = jnp.sum(p, axis=0, keepdims=True, dtype=jnp.float32)
        p_mxu = p
    else:
        p = jnp.exp(e_t - m_new)                                       # [TK, TQ] f32
        p_sum = jnp.sum(p, axis=0, keepdims=True)
        p_mxu = p.astype(jnp.bfloat16)

    l_scr[...] = alpha * l_scr[...] + p_sum
    acc_scr[...] = alpha * acc_scr[...] + jnp.dot(
        v, p_mxu, preferred_element_type=jnp.float32)                  # [C, TQ]
    m_scr[...] = m_new

    @pl.when(ki == nk - 1)
    def _finalize():
        inv_l = pl.reciprocal(l_scr[...], approx=True)                 # [1, TQ]
        out = acc_scr[...] * inv_l                                     # [C, TQ]
        o_ref[0] = (gamma_ref[0, 0] * out + xq_ref[0]).astype(o_ref.dtype)


def _attn_kernel_single(xq_ref, k_ref, v_ref, wq_ref, bq_ref, gamma_ref, o_ref,
                        *, use_bf16_exp):
    # Fast path: the whole key/value axis fits in one tile -> plain softmax,
    # no online-softmax scratch or alpha rescale passes.
    xq = xq_ref[0].astype(jnp.bfloat16)                                # [C, TQ]
    q = jnp.dot(wq_ref[...], xq, preferred_element_type=jnp.float32)
    q = (q + bq_ref[...]).astype(jnp.bfloat16)                         # [C8, TQ]

    k = k_ref[0]                                                       # [C8, HW]
    v = v_ref[0]                                                       # [C, HW]

    e_t = lax.dot_general(k, q,
                          dimension_numbers=(((0,), (0,)), ((), ())),
                          preferred_element_type=jnp.float32)          # [HW, TQ]
    m = jnp.max(e_t, axis=0, keepdims=True)                            # [1, TQ]

    if use_bf16_exp:
        p = jnp.exp((e_t - m).astype(jnp.bfloat16))
        l = jnp.sum(p, axis=0, keepdims=True, dtype=jnp.float32)
        p_mxu = p
    else:
        p = jnp.exp(e_t - m)
        l = jnp.sum(p, axis=0, keepdims=True)
        p_mxu = p.astype(jnp.bfloat16)

    out = jnp.dot(v, p_mxu, preferred_element_type=jnp.float32)        # [C, TQ]
    inv_l = pl.reciprocal(l, approx=True)
    o_ref[0] = (gamma_ref[0, 0] * (out * inv_l) + xq_ref[0]).astype(o_ref.dtype)


# ---------------------------------------------------------------------------
# Tiling / config helpers
# ---------------------------------------------------------------------------
def _pick_tiles(hw, batch):
    # KV tile: 256-512 lanes keeps the MXU energy pass amortized without
    # inflating the [TK, TQ] f32 temporaries.
    tk = hw
    for t in (512, 256, 128):
        if hw % t == 0:
            tk = t
            break
    # Q tile: as large as VMEM comfortably allows (fewer KV re-streams and grid
    # steps) while keeping the parallel extent B*nq >= 2 so v7x's 2 TensorCores
    # both get work.
    tq = None
    for t in (1024, 512, 256, 128):
        if hw % t == 0 and batch * (hw // t) >= 2:
            tq = t
            break
    if tq is None:
        for t in (1024, 512, 256, 128):
            if hw % t == 0:
                tq = t
                break
    if tq is None:
        tq = hw
    return tq, tk


def _use_bf16_exp():
    # bf16 EUP exists on v6e / v7x; v5e (and older) would only pay extra casts.
    try:
        kind = jax.devices()[0].device_kind.lower()
    except Exception:
        return False
    return any(tag in kind for tag in ("v6", "v7", "7x"))


def _vmem_limit(C, C8, tq, tk, hw, single):
    f32, bf16 = 4, 2
    io = 2 * C * tq * f32 + 2 * C * tq * f32                 # x / out tiles (double-buffered)
    if single:
        kv = 2 * (C8 + C) * hw * bf16
        scratch = 0
        inter = 3 * hw * tq * f32                            # e_t / p temporaries
    else:
        kv = 2 * (C8 + C) * tk * bf16
        scratch = C8 * tq * bf16 + 2 * 8 * tq * f32 + C * tq * f32
        inter = 3 * tk * tq * f32
    weights = C8 * C * bf16 + (C8 + C + 16) * f32
    est = io + kv + scratch + inter + weights
    return int(min(64 * 1024 * 1024, max(32 * 1024 * 1024, 2 * est)))


# ---------------------------------------------------------------------------
# Public wrapper
# ---------------------------------------------------------------------------
def self_attention_2d(x_nchw, wq, bq, wk, bk, wv, bv, gamma):
    """x_nchw: [B, C, H, W] f32.  wq/wk: [C//8, C], wv: [C, C], 1-D biases, scalar gamma."""
    B, C, H, W = x_nchw.shape
    HW = H * W
    C8 = wq.shape[0]

    x3 = x_nchw.reshape(B, C, HW)          # HW stays on lanes; no HBM transpose

    tq, tk = _pick_tiles(HW, B)
    nq = HW // tq
    nkv = HW // tk

    # MXU operands in bf16 (cast once, outside the kernels); biases stay f32.
    wq_b = wq.astype(jnp.bfloat16)
    wk_b = wk.astype(jnp.bfloat16)
    wv_b = wv.astype(jnp.bfloat16)
    bq2 = bq.astype(jnp.float32).reshape(C8, 1)
    bk2 = bk.astype(jnp.float32).reshape(C8, 1)
    bv2 = bv.astype(jnp.float32).reshape(C, 1)
    gamma2 = jnp.asarray(gamma, jnp.float32).reshape(1, 1)

    # Hoisted K/V projections: computed once per spatial position, stored bf16.
    k_all, v_all = _project_kv(x3, wk_b, bk2, wv_b, bv2, tk)

    use_bf16_exp = _use_bf16_exp()

    if nkv == 1:
        kernel = functools.partial(_attn_kernel_single, use_bf16_exp=use_bf16_exp)
        const = lambda b, qi: (0, 0)
        out3 = pl.pallas_call(
            kernel,
            out_shape=jax.ShapeDtypeStruct((B, C, HW), jnp.float32),
            grid=(B, nq),
            in_specs=[
                pl.BlockSpec((1, C, tq), lambda b, qi: (b, 0, qi)),   # x (q side / residual)
                pl.BlockSpec((1, C8, HW), lambda b, qi: (b, 0, 0)),   # K (all, bf16)
                pl.BlockSpec((1, C, HW), lambda b, qi: (b, 0, 0)),    # V (all, bf16)
                pl.BlockSpec((C8, C), const),                         # Wq (bf16)
                pl.BlockSpec((C8, 1), const),                         # bq
                pl.BlockSpec(memory_space=pltpu.SMEM),                # gamma scalar
            ],
            out_specs=pl.BlockSpec((1, C, tq), lambda b, qi: (b, 0, qi)),
            compiler_params=pltpu.CompilerParams(
                dimension_semantics=("parallel", "parallel"),
                vmem_limit_bytes=_vmem_limit(C, C8, tq, tk, HW, True),
            ),
        )(x3, k_all, v_all, wq_b, bq2, gamma2)
    else:
        kernel = functools.partial(_attn_kernel_flash, use_bf16_exp=use_bf16_exp)
        const = lambda b, qi, ki: (0, 0)
        out3 = pl.pallas_call(
            kernel,
            out_shape=jax.ShapeDtypeStruct((B, C, HW), jnp.float32),
            grid=(B, nq, nkv),                 # reduction (KV) axis last
            in_specs=[
                pl.BlockSpec((1, C, tq), lambda b, qi, ki: (b, 0, qi)),   # x (q / residual)
                pl.BlockSpec((1, C8, tk), lambda b, qi, ki: (b, 0, ki)),  # K tile (bf16)
                pl.BlockSpec((1, C, tk), lambda b, qi, ki: (b, 0, ki)),   # V tile (bf16)
                pl.BlockSpec((C8, C), const),                             # Wq (bf16)
                pl.BlockSpec((C8, 1), const),                             # bq
                pl.BlockSpec(memory_space=pltpu.SMEM),                    # gamma scalar
            ],
            out_specs=pl.BlockSpec((1, C, tq), lambda b, qi, ki: (b, 0, qi)),
            scratch_shapes=[
                pltpu.VMEM((C8, tq), jnp.bfloat16),   # cached q projection
                pltpu.VMEM((1, tq), jnp.float32),     # running max
                pltpu.VMEM((1, tq), jnp.float32),     # running denom
                pltpu.VMEM((C, tq), jnp.float32),     # output accumulator
            ],
            compiler_params=pltpu.CompilerParams(
                dimension_semantics=("parallel", "parallel", "arbitrary"),
                vmem_limit_bytes=_vmem_limit(C, C8, tq, tk, HW, False),
            ),
        )(x3, k_all, v_all, wq_b, bq2, gamma2)

    return out3.reshape(B, C, H, W)


# ---------------------------------------------------------------------------
# Plain-JAX (f32) reference mirroring the PyTorch forward
# ---------------------------------------------------------------------------
def _reference(x_nchw, wq, bq, wk, bk, wv, bv, gamma):
    B, C, H, W = x_nchw.shape
    HW = H * W
    xf = x_nchw.reshape(B, C, HW)
    q = jnp.einsum('oc,bcn->bon', wq, xf) + bq[None, :, None]   # [B, C8, HW]
    k = jnp.einsum('oc,bcn->bon', wk, xf) + bk[None, :, None]   # [B, C8, HW]
    v = jnp.einsum('oc,bcn->bon', wv, xf) + bv[None, :, None]   # [B, C, HW]
    query = jnp.transpose(q, (0, 2, 1))                          # [B, HW, C8]
    energy = jnp.einsum('bic,bcj->bij', query, k)                # [B, HW, HW]
    attn = jax.nn.softmax(energy, axis=-1)
    out = jnp.einsum('bcj,bij->bci', v, attn)                    # [B, C, HW]
    out = gamma * out + xf
    return out.reshape(B, C, H, W)


if __name__ == "__main__":
    def run_case(B, C, H, W, seed):
        C8 = C // 8
        key = jax.random.PRNGKey(seed)
        ks = jax.random.split(key, 8)
        x = jax.random.normal(ks[0], (B, C, H, W), jnp.float32)
        wq = jax.random.normal(ks[1], (C8, C), jnp.float32) * 0.1
        bq = jax.random.normal(ks[2], (C8,), jnp.float32) * 0.1
        wk = jax.random.normal(ks[3], (C8, C), jnp.float32) * 0.1
        bk = jax.random.normal(ks[4], (C8,), jnp.float32) * 0.1
        wv = jax.random.normal(ks[5], (C, C), jnp.float32) * 0.1
        bv = jax.random.normal(ks[6], (C,), jnp.float32) * 0.1
        # nn.Parameter(torch.zeros(1)) -> gamma is 0 at init; use a nonzero
        # value so the attention path is actually exercised numerically.
        gamma = jnp.float32(0.5)

        y = jax.block_until_ready(self_attention_2d(x, wq, bq, wk, bk, wv, bv, gamma))
        y_ref = _reference(x, wq, bq, wk, bk, wv, bv, gamma)
        assert y.shape == (B, C, H, W)
        # bf16 MXU operands, (optional) bf16 exp, and the approx reciprocal ->
        # compare against the f32 reference with a relaxed tolerance.
        err = float(jnp.max(jnp.abs(y - y_ref)))
        assert err < 3e-2, f"case B={B} C={C} H={H} W={W}: max err {err}"

    # Small case (primary): single-KV-tile fast path (HW=256 <= TK).
    run_case(2, 32, 16, 16, 0)
    # Larger case: exercises the flash (multi-KV-tile) online-softmax path.
    run_case(1, 32, 32, 32, 1)

    print("KERNEL_OK")
</pallas_src>

<mosaic_0001>
module attributes {stable_mosaic.version = 11 : i64} {
  func.func @_kv_proj_kernel(%arg0: i32, %arg1: i32, %arg2: memref<1x32x256xf32, #tpu.memory_space<vmem>>, %arg3: memref<4x32xbf16, #tpu.memory_space<vmem>>, %arg4: memref<4x1xf32, #tpu.memory_space<vmem>>, %arg5: memref<32x32xbf16, #tpu.memory_space<vmem>>, %arg6: memref<32x1xf32, #tpu.memory_space<vmem>>, %arg7: memref<1x4x256xbf16, #tpu.memory_space<vmem>>, %arg8: memref<1x32x256xbf16, #tpu.memory_space<vmem>>) attributes {dimension_semantics = [#tpu.dimension_semantics<parallel>, #tpu.dimension_semantics<parallel>], iteration_bounds = array<i64: 2, 1>, scalar_prefetch = 0 : i64, scratch_operands = 0 : i64, tpu.core_type = #tpu.core_type<tc>, window_params = [{transform_indices = @transform_0, window_bounds = array<i64: 1, 32, 256>}, {pipeline_mode = #tpu.pipeline_mode<synchronous>, transform_indices = @transform_1, window_bounds = array<i64: 4, 32>}, {pipeline_mode = #tpu.pipeline_mode<synchronous>, transform_indices = @transform_2, window_bounds = array<i64: 4, 1>}, {pipeline_mode = #tpu.pipeline_mode<synchronous>, transform_indices = @transform_3, window_bounds = array<i64: 32, 32>}, {pipeline_mode = #tpu.pipeline_mode<synchronous>, transform_indices = @transform_4, window_bounds = array<i64: 32, 1>}, {transform_indices = @transform_5, window_bounds = array<i64: 1, 4, 256>}, {transform_indices = @transform_6, window_bounds = array<i64: 1, 32, 256>}]} {
    %c0 = arith.constant 0 : index
    %c0_0 = arith.constant 0 : index
    %c0_1 = arith.constant 0 : index
    %0 = vector.load %arg2[%c0, %c0_0, %c0_1] : memref<1x32x256xf32, #tpu.memory_space<vmem>>, vector<1x32x256xf32>
    %1 = vector.shape_cast %0 : vector<1x32x256xf32> to vector<32x256xf32>
    %2 = arith.truncf %1 : vector<32x256xf32> to vector<32x256xbf16>
    %c0_2 = arith.constant 0 : index
    %c0_3 = arith.constant 0 : index
    %3 = vector.load %arg3[%c0_2, %c0_3] : memref<4x32xbf16, #tpu.memory_space<vmem>>, vector<4x32xbf16>
    %cst = arith.constant dense<0.000000e+00> : vector<4x256xf32>
    %4 = tpu.matmul %3, %2, %cst {dimension_numbers = #tpu.dot_dimension_numbers<[1], [0], [0], [1], [0, 0, 1, 1], [], []>} : vector<4x32xbf16>, vector<32x256xbf16>, vector<4x256xf32> -> vector<4x256xf32>
    %c0_4 = arith.constant 0 : index
    %c0_5 = arith.constant 0 : index
    %5 = vector.load %arg5[%c0_4, %c0_5] : memref<32x32xbf16, #tpu.memory_space<vmem>>, vector<32x32xbf16>
    %cst_6 = arith.constant dense<0.000000e+00> : vector<32x256xf32>
    %6 = tpu.matmul %5, %2, %cst_6 {dimension_numbers = #tpu.dot_dimension_numbers<[1], [0], [0], [1], [0, 0, 1, 1], [], []>} : vector<32x32xbf16>, vector<32x256xbf16>, vector<32x256xf32> -> vector<32x256xf32>
    %c0_7 = arith.constant 0 : index
    %c0_8 = arith.constant 0 : index
    %7 = vector.load %arg4[%c0_7, %c0_8] : memref<4x1xf32, #tpu.memory_space<vmem>>, vector<4x1xf32>
    %8 = vector.broadcast %7 : vector<4x1xf32> to vector<4x256xf32>
    %9 = arith.addf %4, %8 : vector<4x256xf32>
    %10 = arith.truncf %9 : vector<4x256xf32> to vector<4x256xbf16>
    %c0_9 = arith.constant 0 : index
    %c0_10 = arith.constant 0 : index
    %c0_11 = arith.constant 0 : index
    %11 = vector.load %arg7[%c0_9, %c0_10, %c0_11] : memref<1x4x256xbf16, #tpu.memory_space<vmem>>, vector<1x4x256xbf16>
    %12 = vector.shape_cast %11 : vector<1x4x256xbf16> to vector<4x256xbf16>
    %13 = vector.shape_cast %10 : vector<4x256xbf16> to vector<1x4x256xbf16>
    tpu.vector_store %arg7[%c0_9, %c0_10, %c0_11], %13 {strides = array<i32>} : memref<1x4x256xbf16, #tpu.memory_space<vmem>>, vector<1x4x256xbf16>,
    %c0_12 = arith.constant 0 : index
    %c0_13 = arith.constant 0 : index
    %14 = vector.load %arg6[%c0_12, %c0_13] : memref<32x1xf32, #tpu.memory_space<vmem>>, vector<32x1xf32>
    %15 = vector.broadcast %14 : vector<32x1xf32> to vector<32x256xf32>
    %16 = arith.addf %6, %15 : vector<32x256xf32>
    %17 = arith.truncf %16 : vector<32x256xf32> to vector<32x256xbf16>
    %c0_14 = arith.constant 0 : index
    %c0_15 = arith.constant 0 : index
    %c0_16 = arith.constant 0 : index
    %18 = vector.load %arg8[%c0_14, %c0_15, %c0_16] : memref<1x32x256xbf16, #tpu.memory_space<vmem>>, vector<1x32x256xbf16>
    %19 = vector.shape_cast %18 : vector<1x32x256xbf16> to vector<32x256xbf16>
    %20 = vector.shape_cast %17 : vector<32x256xbf16> to vector<1x32x256xbf16>
    tpu.vector_store %arg8[%c0_14, %c0_15, %c0_16], %20 {strides = array<i32>} : memref<1x32x256xbf16, #tpu.memory_space<vmem>>, vector<1x32x256xbf16>,
    return
  }
  func.func @transform_0(%arg0: i32, %arg1: i32) -> (i32, i32, i32) {
    %c0_i32 = arith.constant 0 : i32
    %c0_i32_0 = arith.constant 0 : i32
    return %arg0, %c0_i32, %arg1 : i32, i32, i32
  }
  func.func @transform_1(%arg0: i32, %arg1: i32) -> (i32, i32) {
    %c0_i32 = arith.constant 0 : i32
    %c0_i32_0 = arith.constant 0 : i32
    %c0_i32_1 = arith.constant 0 : i32
    return %c0_i32, %c0_i32_0 : i32, i32
  }
  func.func @transform_2(%arg0: i32, %arg1: i32) -> (i32, i32) {
    %c0_i32 = arith.constant 0 : i32
    %c0_i32_0 = arith.constant 0 : i32
    %c0_i32_1 = arith.constant 0 : i32
    return %c0_i32, %c0_i32_0 : i32, i32
  }
  func.func @transform_3(%arg0: i32, %arg1: i32) -> (i32, i32) {
    %c0_i32 = arith.constant 0 : i32
    %c0_i32_0 = arith.constant 0 : i32
    %c0_i32_1 = arith.constant 0 : i32
    return %c0_i32, %c0_i32_0 : i32, i32
  }
  func.func @transform_4(%arg0: i32, %arg1: i32) -> (i32, i32) {
    %c0_i32 = arith.constant 0 : i32
    %c0_i32_0 = arith.constant 0 : i32
    %c0_i32_1 = arith.constant 0 : i32
    return %c0_i32, %c0_i32_0 : i32, i32
  }
  func.func @transform_5(%arg0: i32, %arg1: i32) -> (i32, i32, i32) {
    %c0_i32 = arith.constant 0 : i32
    %c0_i32_0 = arith.constant 0 : i32
    return %arg0, %c0_i32, %arg1 : i32, i32, i32
  }
  func.func @transform_6(%arg0: i32, %arg1: i32) -> (i32, i32, i32) {
    %c0_i32 = arith.constant 0 : i32
    %c0_i32_0 = arith.constant 0 : i32
    return %arg0, %c0_i32, %arg1 : i32, i32, i32
  }
}

</mosaic_0001>

<llo_original>
// kernel: tpu_custom_call.1
$region0: #{tpu_custom_call.1}
  #allocation0 [shape = 'u32[]', space=smem, size = 0x4, offset = 0x4, fixed_abs, tag = 'smem constant byte address 0x4 - core index']
  #allocation1 [shape = 'u32[72,128]{1,0:T(1,128)}', space=vmem, size = 0x9000, scoped, tag = 'internal scratch']
  %s0 = inlined_call_operand.hbm [shape: f32[2,32,256], index: 0, kind: input, shape index: {}]
  %s1 = inlined_call_operand.vmem [shape: bf16[4,32], index: 1, kind: input, shape index: {}]
  %s2 = inlined_call_operand.vmem [shape: f32[4,1], index: 2, kind: input, shape index: {}]
  %s3 = inlined_call_operand.vmem [shape: bf16[32,32], index: 3, kind: input, shape index: {}]
  %s4 = inlined_call_operand.vmem [shape: f32[32,1], index: 4, kind: input, shape index: {}]
  %s5 = inlined_call_operand.hbm [shape: bf16[2,4,256], index: 5, kind: output, shape index: {0}]
  %s6 = inlined_call_operand.hbm [shape: bf16[2,32,256], index: 6, kind: output, shape index: {1}]
  %7 = xla_tuple %s5, %s6
  %s8 = sld [smem:[#allocation0]]
  $region65: #{tpu_custom_call.1} parent=0
    _
  %s10 = ssub.s32 1, %s8
  %s11 = scalar_select 0, %s10, %s8
  $region1: #{tpu_custom_call.1} parent=0
    #allocation2 [shape = 'u8[65536]{0}', space=vmem, size = 0x10000, scoped, tag = 'input window, operand 0']
    #allocation3 [shape = 's32[2]{0}', space=sflag, size = 0x8, scoped, tag = 'scoped memory for tpu_custom_call.1']
    #allocation4 [shape = 's32[2]{0}', space=sflag, size = 0x8, scoped, tag = 'scoped memory for tpu_custom_call.1']
    #allocation5 [shape = 'u8[4096]{0}', space=vmem, size = 0x1000, scoped, tag = 'output window, operand 0']
    #allocation6 [shape = 'u8[32768]{0}', space=vmem, size = 0x8000, scoped, tag = 'output window, operand 1']
    #allocation7 [shape = 's32[2]{0}', space=sflag, size = 0x8, scoped, tag = 'scoped memory for tpu_custom_call.1']
    %12 = vsyncpa [#allocation3], 0
    %s13 = scalar_lea.sflag [#allocation3], 1
    %14 = vsyncpa %s13, 0
    %15 = vsyncpa [#allocation4], 0
    %s16 = scalar_lea.sflag [#allocation4], 1
    %17 = vsyncpa %s16, 0
    %18 = vsyncpa [#allocation7], 0
    %s19 = scalar_lea.sflag [#allocation7], 1
    %20 = vsyncpa %s19, 0
    loop: start=0, step=1, limit=4
    $region2: #{tpu_custom_call.1} parent=1 // loop_pre_header
      _
    $region3: #{tpu_custom_call.1} parent=1 // loop_header
      %s22 = sphi 0, %s26
      %p23 = scmp.ge.s32.totalorder %s22, 4
      %s29 = sphi 0, %s41
      %s30 = sphi 0, %s37
      %s31 = sphi 0, %s29
      %s32 = sphi 0, %s30
      %s33 = sphi 0, %s31
      %s34 = sphi 0, %s32
      %s46 = sphi 0, %s48
      %s49 = sphi 0, %s46
      %s50 = sphi 0, %s49
      %s66 = sphi 0, %s50
      %s70 = sphi 0, %s70
      %s72 = sphi 0, %s70
      %s73 = sphi 0, %s72
      %s87 = sphi 0, %s73
      %s91 = sphi 0, %s91
      %s93 = sphi 0, %s91
      %s94 = sphi 0, %s93
      %s108 = sphi 0, %s94
      %s112 = sphi 0, %s112
      %s114 = sphi 0, %s112
      %s115 = sphi 0, %s114
      %s129 = sphi 0, %s115
      %s133 = sphi 0, %s133
      %s135 = sphi 0, %s133
      %s136 = sphi 0, %s135
      %s150 = sphi 0, %s136
      %s158 = sphi 0, %s160
      %s161 = sphi 0, %s158
      %s162 = sphi 0, %s161
      %s178 = sphi 0, %s162
      %s186 = sphi 0, %s188
      %s189 = sphi 0, %s186
      %s190 = sphi 0, %s189
      %s206 = sphi 0, %s190
    $region4: #{tpu_custom_call.1} parent=1 // loop_header_branch
      %25 = sbr.rel (%p23) target = $region8
    $region5: #{tpu_custom_call.1} parent=1 // loop_body
      %s27 = ssub.s32 %s22, 1
      %s28 = ssub.s32 %s22, 2
      %s35 = sadd.s32 1, %s30
      %p36 = scmp.ge.s32.totalorder %s35, 1
      %s37 = scalar_select %p36, 0, %s35
      %s38 = sadd.s32 1, %s29
      %s39 = scalar_select %p36, %s38, %s29
      %p40 = scmp.ge.s32.totalorder %s39, 2
      %s41 = scalar_select %p40, 0, %s39
      %s42 = ssub.s32 %s29, %s41
      %s43 = ssub.s32 %s30, %s37
      %s44 = sor.u32 %s42, %s43
      %p45 = scmp.eq.s32.totalorder %s44, 0
      %s47 = sadd.s32 %s46, 1
      %s48 = scalar_select %p45, %s46, %s47
      %p51 = pneg %p45
      %p52 = scmp.eq.s32.totalorder %s22, 1
      %p53 = por %p51, %p52
      %p54 = scmp.ne.s32.totalorder %s46, %s49
      %p55 = scmp.eq.s32.totalorder %s22, 0
      %p56 = por %p54, %p55
      %p57 = scmp.ne.s32.totalorder %s46, %s49
      %p58 = scmp.eq.s32.totalorder %s27, 1
      %p59 = por %p57, %p58
      %p60 = scmp.ne.s32.totalorder %s49, %s50
      %p61 = scmp.eq.s32.totalorder %s27, 0
      %p62 = por %p60, %p61
      %p63 = scmp.ne.s32.totalorder %s49, %s50
      %p64 = scmp.eq.s32.totalorder %s28, 1
      %p65 = por %p63, %p64
      %p67 = scmp.ne.s32.totalorder %s50, %s66
      %p68 = scmp.eq.s32.totalorder %s28, 0
      %p69 = por %p67, %p68
      %s71 = sadd.s32 %s70, 1
      %p74 = scmp.eq.s32.totalorder %s22, 1
      %p75 = scmp.ne.s32.totalorder %s70, %s72
      %p76 = scmp.eq.s32.totalorder %s22, 0
      %p77 = por %p75, %p76
      %p78 = scmp.ne.s32.totalorder %s70, %s72
      %p79 = scmp.eq.s32.totalorder %s27, 1
      %p80 = por %p78, %p79
      %p81 = scmp.ne.s32.totalorder %s72, %s73
      %p82 = scmp.eq.s32.totalorder %s27, 0
      %p83 = por %p81, %p82
      %p84 = scmp.ne.s32.totalorder %s72, %s73
      %p85 = scmp.eq.s32.totalorder %s28, 1
      %p86 = por %p84, %p85
      %p88 = scmp.ne.s32.totalorder %s73, %s87
      %p89 = scmp.eq.s32.totalorder %s28, 0
      %p90 = por %p88, %p89
      %s92 = sadd.s32 %s91, 1
      %p95 = scmp.eq.s32.totalorder %s22, 1
      %p96 = scmp.ne.s32.totalorder %s91, %s93
      %p97 = scmp.eq.s32.totalorder %s22, 0
      %p98 = por %p96, %p97
      %p99 = scmp.ne.s32.totalorder %s91, %s93
      %p100 = scmp.eq.s32.totalorder %s27, 1
      %p101 = por %p99, %p100
      %p102 = scmp.ne.s32.totalorder %s93, %s94
      %p103 = scmp.eq.s32.totalorder %s27, 0
      %p104 = por %p102, %p103
      %p105 = scmp.ne.s32.totalorder %s93, %s94
      %p106 = scmp.eq.s32.totalorder %s28, 1
      %p107 = por %p105, %p106
      %p109 = scmp.ne.s32.totalorder %s94, %s108
      %p110 = scmp.eq.s32.totalorder %s28, 0
      %p111 = por %p109, %p110
      %s113 = sadd.s32 %s112, 1
      %p116 = scmp.eq.s32.totalorder %s22, 1
      %p117 = scmp.ne.s32.totalorder %s112, %s114
      %p118 = scmp.eq.s32.totalorder %s22, 0
      %p119 = por %p117, %p118
      %p120 = scmp.ne.s32.totalorder %s112, %s114
      %p121 = scmp.eq.s32.totalorder %s27, 1
      %p122 = por %p120, %p121
      %p123 = scmp.ne.s32.totalorder %s114, %s115
      %p124 = scmp.eq.s32.totalorder %s27, 0
      %p125 = por %p123, %p124
      %p126 = scmp.ne.s32.totalorder %s114, %s115
      %p127 = scmp.eq.s32.totalorder %s28, 1
      %p128 = por %p126, %p127
      %p130 = scmp.ne.s32.totalorder %s115, %s129
      %p131 = scmp.eq.s32.totalorder %s28, 0
      %p132 = por %p130, %p131
      %s134 = sadd.s32 %s133, 1
      %p137 = scmp.eq.s32.totalorder %s22, 1
      %p138 = scmp.ne.s32.totalorder %s133, %s135
      %p139 = scmp.eq.s32.totalorder %s22, 0
      %p140 = por %p138, %p139
      %p141 = scmp.ne.s32.totalorder %s133, %s135
      %p142 = scmp.eq.s32.totalorder %s27, 1
      %p143 = por %p141, %p142
      %p144 = scmp.ne.s32.totalorder %s135, %s136
      %p145 = scmp.eq.s32.totalorder %s27, 0
      %p146 = por %p144, %p145
      %p147 = scmp.ne.s32.totalorder %s135, %s136
      %p148 = scmp.eq.s32.totalorder %s28, 1
      %p149 = por %p147, %p148
      %p151 = scmp.ne.s32.totalorder %s136, %s150
      %p152 = scmp.eq.s32.totalorder %s28, 0
      %p153 = por %p151, %p152
      %s154 = ssub.s32 %s29, %s41
      %s155 = ssub.s32 %s30, %s37
      %s156 = sor.u32 %s154, %s155
      %p157 = scmp.eq.s32.totalorder %s156, 0
      %s159 = sadd.s32 %s158, 1
      %s160 = scalar_select %p157, %s158, %s159
      %p163 = pneg %p157
      %p164 = scmp.eq.s32.totalorder %s22, 1
      %p165 = por %p163, %p164
      %p166 = scmp.ne.s32.totalorder %s158, %s161
      %p167 = scmp.eq.s32.totalorder %s22, 0
      %p168 = por %p166, %p167
      %p169 = scmp.ne.s32.totalorder %s158, %s161
      %p170 = scmp.eq.s32.totalorder %s27, 1
      %p171 = por %p169, %p170
      %p172 = scmp.ne.s32.totalorder %s161, %s162
      %p173 = scmp.eq.s32.totalorder %s27, 0
      %p174 = por %p172, %p173
      %p175 = scmp.ne.s32.totalorder %s161, %s162
      %p176 = scmp.eq.s32.totalorder %s28, 1
      %p177 = por %p175, %p176
      %p179 = scmp.ne.s32.totalorder %s162, %s178
      %p180 = scmp.eq.s32.totalorder %s28, 0
      %p181 = por %p179, %p180
      %s182 = ssub.s32 %s29, %s41
      %s183 = ssub.s32 %s30, %s37
      %s184 = sor.u32 %s182, %s183
      %p185 = scmp.eq.s32.totalorder %s184, 0
      %s187 = sadd.s32 %s186, 1
      %s188 = scalar_select %p185, %s186, %s187
      %p191 = pneg %p185
      %p192 = scmp.eq.s32.totalorder %s22, 1
      %p193 = por %p191, %p192
      %p194 = scmp.ne.s32.totalorder %s186, %s189
      %p195 = scmp.eq.s32.totalorder %s22, 0
      %p196 = por %p194, %p195
      %p197 = scmp.ne.s32.totalorder %s186, %s189
      %p198 = scmp.eq.s32.totalorder %s27, 1
      %p199 = por %p197, %p198
      %p200 = scmp.ne.s32.totalorder %s189, %s190
      %p201 = scmp.eq.s32.totalorder %s27, 0
      %p202 = por %p200, %p201
      %p203 = scmp.ne.s32.totalorder %s189, %s190
      %p204 = scmp.eq.s32.totalorder %s28, 1
      %p205 = por %p203, %p204
      %p207 = scmp.ne.s32.totalorder %s190, %s206
      %p208 = scmp.eq.s32.totalorder %s28, 0
      %p209 = por %p207, %p208
      %p210 = scmp.le.s32.totalorder 1, %s22
      %p211 = scmp.lt.s32.totalorder %s22, 3
      %p212 = pnand %p210, %p211
      %p213 = pneg %p212
      // Predicated region
      $region9: #{tpu_custom_call.1} parent=5 // pred_check
        _
      $region10: #{tpu_custom_call.1} parent=5 // pred_check_branch
        %215 = sbr.rel (%p212) target = $region12
      $region11: #{tpu_custom_call.1} parent=5 // pred_region
        %s216 = ssub.s32 %s22, 1
        // Predicated region
        $region13: #{tpu_custom_call.1} parent=11 // pred_check
          %p217 = pneg %p83
        $region14: #{tpu_custom_call.1} parent=11 // pred_check_branch
          %219 = sbr.rel (%p217) target = $region16
        $region15: #{tpu_custom_call.1} parent=11 // pred_region
          _
        $region16: #{tpu_custom_call.1} parent=11 // pred_fallthru
          _
        // Predicated region
        $region17: #{tpu_custom_call.1} parent=11 // pred_check
          %p220 = pneg %p104
        $region18: #{tpu_custom_call.1} parent=11 // pred_check_branch
          %222 = sbr.rel (%p220) target = $region20
        $region19: #{tpu_custom_call.1} parent=11 // pred_region
          _
        $region20: #{tpu_custom_call.1} parent=11 // pred_fallthru
          _
        // Predicated region
        $region21: #{tpu_custom_call.1} parent=11 // pred_check
          %p223 = pneg %p125
        $region22: #{tpu_custom_call.1} parent=11 // pred_check_branch
          %225 = sbr.rel (%p223) target = $region24
        $region23: #{tpu_custom_call.1} parent=11 // pred_region
          _
        $region24: #{tpu_custom_call.1} parent=11 // pred_fallthru
          _
        // Predicated region
        $region25: #{tpu_custom_call.1} parent=11 // pred_check
          %p226 = pneg %p146
        $region26: #{tpu_custom_call.1} parent=11 // pred_check_branch
          %228 = sbr.rel (%p226) target = $region28
        $region27: #{tpu_custom_call.1} parent=11 // pred_region
          _
        $region28: #{tpu_custom_call.1} parent=11 // pred_fallthru
          _
      $region12: #{tpu_custom_call.1} parent=5 // pred_fallthru
        _
      %p229 = scmp.lt.s32.totalorder %s22, 2
      // Predicated region
      $region29: #{tpu_custom_call.1} parent=5 // pred_check
        %p230 = pneg %p229
      $region30: #{tpu_custom_call.1} parent=5 // pred_check_branch
        %232 = sbr.rel (%p230) target = $region32
      $region31: #{tpu_custom_call.1} parent=5 // pred_region
        // Predicated region
        $region33: #{tpu_custom_call.1} parent=31 // pred_check
          %p233 = pneg %p56
        $region34: #{tpu_custom_call.1} parent=31 // pred_check_branch
          %235 = sbr.rel (%p233) target = $region36
        $region35: #{tpu_custom_call.1} parent=31 // pred_region
          %s236 = sand.u32 %s46, 1
          %s237 = scalar_lea.sflag [#allocation3], %s236
          %s238 = sand.u32 %s46, 1
          %s239 = smul.addr %s238, 64
          %s240 = scalar_lea.vmem [#allocation2], %s239
          %s241 = smul.u32 2, %s30
          %243 = vsyncadd %s237, 0
          %s244 = smul.addr %s29, 8
          %s245 = sadd.s32 %s241, %s244
          %s246 = smul.addr %s245, 8
          %s247 = scalar_lea.hbm %s0, %s246
          %s248 = sshll.u32 %s247, 4
          %s249 = int_to_ptr.hbm [resolvable:$true] %s248
          %s250 = sshll.u32 %s240, 4
          %s251 = int_to_ptr.vmem [resolvable:$true] %s250
          %256 = dma.hbm_to_vmem [thread:$0]  %s249, 1024, %s251, %s237, 256, 256, 16
        $region36: #{tpu_custom_call.1} parent=31 // pred_fallthru
          _
      $region32: #{tpu_custom_call.1} parent=5 // pred_fallthru
        _
      %p257 = scmp.le.s32.totalorder 1, %s22
      %p258 = scmp.lt.s32.totalorder %s22, 3
      %p259 = pnand %p257, %p258
      %p260 = pneg %p259
      // Predicated region
      $region37: #{tpu_custom_call.1} parent=5 // pred_check
        _
      $region38: #{tpu_custom_call.1} parent=5 // pred_check_branch
        %262 = sbr.rel (%p259) target = $region40
      $region39: #{tpu_custom_call.1} parent=5 // pred_region
        %s263 = ssub.s32 %s22, 1
        %s264 = sand.u32 %s49, 1
        %s265 = scalar_lea.sflag [#allocation3], %s264
        %s266 = sand.u32 %s49, 1
        %s267 = smul.addr %s266, 64
        %s268 = scalar_lea.vmem [#allocation2], %s267
        // Predicated region
        $region41: #{tpu_custom_call.1} parent=39 // pred_check
          %p269 = pneg %p62
        $region42: #{tpu_custom_call.1} parent=39 // pred_check_branch
          %271 = sbr.rel (%p269) target = $region44
        $region43: #{tpu_custom_call.1} parent=39 // pred_region
          %273 = dma.done %s265, 1024
        $region44: #{tpu_custom_call.1} parent=39 // pred_fallthru
          _
        %s274 = sand.u32 %s49, 1
        %s275 = scalar_lea.sflag [#allocation3], %s274
        %s276 = sand.u32 %s49, 1
        %s277 = smul.addr %s276, 64
        %s278 = scalar_lea.vmem [#allocation2], %s277
        %p279 = pneg %p62
        %p280 = pneg %p59
        %p281 = pneg %p83
        %p282 = pneg %p80
        %p283 = pneg %p104
        %p284 = pneg %p101
        %p285 = pneg %p125
        %p286 = pneg %p122
        %p287 = pneg %p146
        %p288 = pneg %p143
        %p289 = pneg %p174
        %p290 = pneg %p171
        %s291 = sand.u32 %s161, 1
        %s292 = scalar_lea.sflag [#allocation4], %s291
        %s293 = sand.u32 %s161, 1
        %s294 = smul.addr %s293, 4
        %s295 = scalar_lea.vmem [#allocation5], %s294
        %p296 = pneg %p202
        %p297 = pneg %p199
        %s298 = sand.u32 %s189, 1
        %s299 = scalar_lea.sflag [#allocation7], %s298
        %s300 = sand.u32 %s189, 1
        %s301 = smul.addr %s300, 32
        %s302 = scalar_lea.vmem [#allocation6], %s301
        %s303 = smul.u32 2, %s32
        %s304 = smul.u32 2, %s32
        %s305 = smul.u32 2, %s32
        %v307 = vld [vmem:[%s268] sm:$0xff]
        %v308 = vld [vmem:[%s268 + $0x8] sm:$0xff]
        %v309 = vld [vmem:[%s268 + $0x10] sm:$0xff]
        %v310 = vld [vmem:[%s268 + $0x18] sm:$0xff]
        %v311 = vld [vmem:[%s268 + $0x20] sm:$0xff]
        %v312 = vld [vmem:[%s268 + $0x28] sm:$0xff]
        %v313 = vld [vmem:[%s268 + $0x30] sm:$0xff]
        %v314 = vld [vmem:[%s268 + $0x38] sm:$0xff]
        %v315 = vpack.c.bf16 %v309, %v307
        %v316 = vpack.c.bf16 %v310, %v308
        %v317 = vpack.c.bf16 %v313, %v311
        %v318 = vpack.c.bf16 %v314, %v312
        %v319 = vld [vmem:[%s1] sm:$0x3]
        %v320 = vld [vmem:[%s3] sm:$0xf]
        %v321 = vld [vmem:[%s3 + $0x4] sm:$0xf]
        %v322 = vld [vmem:[%s3 + $0x8] sm:$0xf]
        %v323 = vld [vmem:[%s3 + $0xc] sm:$0xf]
        %v324 = vld [vmem:[%s2] sm:$0xf]
        %326 = vset.pattern.permute.xlu0 0
        %327 = vperm.xlu0 %326, %v324
        %v328 = vpop.permute.xlu0 %327
        %vm330 = vcmask 261120
        %v332 = vsel %vm330, %v319, 0
        %334 = vmatpush.bf16.msra.mxu0 0
        %335 = vmatpush.bf16.msra.mxu0 0
        %336 = vmatpush.bf16.msra.mxu0 0
        %337 = vmatpush.bf16.msra.mxu0 0
        %338 = vmatpush.bf16.msra.mxu0 0
        %339 = vmatpush.bf16.msra.mxu0 0
        %340 = vmatpush.bf16.msra.mxu0 %v317
        %341 = vmatpush.bf16.msra.mxu0 %v315
        %342 = vmatmul.bf16.gmra.mxu0 %v332
        %v343 = vpop.f32.mrf.mxu0
        %v344 = vadd.f32 %v328, %v343
        %v345 = vpop.f32.mrf.mxu0
        %346 = vdwg.mxu0
        %347 = vmatpush.bf16.msra.mxu0 0
        %348 = vmatpush.bf16.msra.mxu0 0
        %349 = vmatpush.bf16.msra.mxu0 0
        %350 = vmatpush.bf16.msra.mxu0 0
        %351 = vmatpush.bf16.msra.mxu0 0
        %352 = vmatpush.bf16.msra.mxu0 0
        %353 = vmatpush.bf16.msra.mxu0 %v318
        %354 = vmatpush.bf16.msra.mxu0 %v316
        %355 = vmatmul.bf16.gmra.mxu0 %v332
        %v356 = vpop.f32.mrf.mxu0
        %v357 = vadd.f32 %v328, %v356
        %v358 = vpop.f32.mrf.mxu0
        %359 = vdwg.mxu0
        %v360 = vpack.c.bf16 %v357, %v344
        %v362 = vrot.slane %v360, 2
        %vm363 = vcmask 1041408
        %v366 = vsel %vm363, %v360, %v362
        %368 = vst [vmem:[%s295] sm:$0xf] %v366
        %v369 = vld [vmem:[%s4] sm:$0xff]
        %v370 = vld [vmem:[%s4 + $0x8] sm:$0xff]
        %v371 = vld [vmem:[%s4 + $0x10] sm:$0xff]
        %v372 = vld [vmem:[%s4 + $0x18] sm:$0xff]
        %374 = vset.pattern.permute.xlu0 0
        %375 = vperm.xlu0 %374, %v369
        %v376 = vpop.permute.xlu0 %375
        %379 = vset.pattern.permute.xlu0 0
        %380 = vperm.xlu0 %379, %v370
        %v381 = vpop.permute.xlu0 %380
        %384 = vset.pattern.permute.xlu0 0
        %385 = vperm.xlu0 %384, %v371
        %v386 = vpop.permute.xlu0 %385
        %389 = vset.pattern.permute.xlu0 0
        %390 = vperm.xlu0 %389, %v372
        %v391 = vpop.permute.xlu0 %390
        %v397 = vunpack.c.l.b16 %v320
        %v398 = vunpack.c.l.b16 %v321
        %v399 = vunpack.c.l.b16 %v322
        %v400 = vunpack.c.l.b16 %v323
        %v401 = vpack.c.b16 %v398, %v397
        %v402 = vpack.c.b16 %v400, %v399
        %v404 = vsel %vm330, %v401, 0
        %v407 = vsel %vm330, %v402, 0
        %409 = vmatpush.bf16.msra.mxu0 0
        %410 = vmatpush.bf16.msra.mxu0 0
        %411 = vmatpush.bf16.msra.mxu0 0
        %412 = vmatpush.bf16.msra.mxu0 0
        %413 = vmatpush.bf16.msra.mxu0 0
        %414 = vmatpush.bf16.msra.mxu0 0
        %415 = vmatpush.bf16.msra.mxu0 %v317
        %416 = vmatpush.bf16.msra.mxu0 %v315
        %417 = vmatmul.bf16.gmra.mxu0 %v404
        %v418 = vpop.f32.mrf.mxu0
        %v419 = vadd.f32 %v376, %v418
        %v420 = vpop.f32.mrf.mxu0
        %v421 = vadd.f32 %v381, %v420
        %422 = vmatmul.bf16.gmra.mxu0 %v407
        %v423 = vpop.f32.mrf.mxu0
        %v424 = vadd.f32 %v386, %v423
        %v425 = vpop.f32.mrf.mxu0
        %v426 = vadd.f32 %v391, %v425
        %427 = vdwg.mxu0
        %428 = vmatpush.bf16.msra.mxu0 0
        %429 = vmatpush.bf16.msra.mxu0 0
        %430 = vmatpush.bf16.msra.mxu0 0
        %431 = vmatpush.bf16.msra.mxu0 0
        %432 = vmatpush.bf16.msra.mxu0 0
        %433 = vmatpush.bf16.msra.mxu0 0
        %434 = vmatpush.bf16.msra.mxu0 %v318
        %435 = vmatpush.bf16.msra.mxu0 %v316
        %436 = vmatmul.bf16.gmra.mxu0 %v404
        %v437 = vpop.f32.mrf.mxu0
        %v438 = vadd.f32 %v376, %v437
        %v439 = vpop.f32.mrf.mxu0
        %v440 = vadd.f32 %v381, %v439
        %441 = vmatmul.bf16.gmra.mxu0 %v407
        %v442 = vpop.f32.mrf.mxu0
        %v443 = vadd.f32 %v386, %v442
        %v444 = vpop.f32.mrf.mxu0
        %v445 = vadd.f32 %v391, %v444
        %446 = vdwg.mxu0
        %v447 = vpack.c.bf16 %v438, %v419
        %v448 = vpack.c.bf16 %v440, %v421
        %v449 = vpack.c.bf16 %v443, %v424
        %v450 = vpack.c.bf16 %v445, %v426
        %451 = vst [vmem:[%s302] sm:$0xff] %v447
        %452 = vst [vmem:[%s302 + $0x8] sm:$0xff] %v448
        %453 = vst [vmem:[%s302 + $0x10] sm:$0xff] %v449
        %454 = vst [vmem:[%s302 + $0x18] sm:$0xff] %v450
        %s455 = sand.u32 %s161, 1
        %s456 = scalar_lea.sflag [#allocation4], %s455
        %s457 = sand.u32 %s161, 1
        %s458 = smul.addr %s457, 4
        %s459 = scalar_lea.vmem [#allocation5], %s458
        %s460 = sand.u32 %s189, 1
        %s461 = scalar_lea.sflag [#allocation7], %s460
        %s462 = sand.u32 %s189, 1
        %s463 = smul.addr %s462, 32
        %s464 = scalar_lea.vmem [#allocation6], %s463
        // Predicated region
        $region45: #{tpu_custom_call.1} parent=39 // pred_check
          %p465 = pneg %p171
        $region46: #{tpu_custom_call.1} parent=39 // pred_check_branch
          %467 = sbr.rel (%p465) target = $region48
        $region47: #{tpu_custom_call.1} parent=39 // pred_region
          %s468 = smul.u32 2, %s32
          %470 = vsyncadd %s456, 0
          %s471 = smul.addr %s31, 2
          %s472 = sadd.s32 %s468, %s471
          %s473 = smul.addr %s472, 2
          %s474 = scalar_lea.hbm %s5, %s473
          %s476 = sshll.u32 %s459, 4
          %s477 = int_to_ptr.vmem [resolvable:$true] %s476
          %s478 = sshll.u32 %s474, 4
          %s479 = int_to_ptr.hbm [resolvable:$true] %s478
          %481 = dma.vmem_to_hbm [thread:$0]  %s477, 64, %s479, %s456
        $region48: #{tpu_custom_call.1} parent=39 // pred_fallthru
          _
        // Predicated region
        $region49: #{tpu_custom_call.1} parent=39 // pred_check
          %p482 = pneg %p199
        $region50: #{tpu_custom_call.1} parent=39 // pred_check_branch
          %484 = sbr.rel (%p482) target = $region52
        $region51: #{tpu_custom_call.1} parent=39 // pred_region
          %s485 = smul.u32 2, %s32
          %487 = vsyncadd %s461, 0
          %s488 = smul.addr %s31, 8
          %s489 = sadd.s32 %s485, %s488
          %s490 = smul.addr %s489, 4
          %s491 = scalar_lea.hbm %s6, %s490
          %s492 = sshll.u32 %s464, 4
          %s493 = int_to_ptr.vmem [resolvable:$true] %s492
          %s494 = sshll.u32 %s491, 4
          %s495 = int_to_ptr.hbm [resolvable:$true] %s494
          %500 = dma.vmem_to_hbm [thread:$0]  %s493, 512, %s495, %s461, 128, 128, 8
        $region52: #{tpu_custom_call.1} parent=39 // pred_fallthru
          _
      $region40: #{tpu_custom_call.1} parent=5 // pred_fallthru
        _
      %p501 = scmp.le.s32.totalorder 2, %s22
      // Predicated region
      $region53: #{tpu_custom_call.1} parent=5 // pred_check
        %p502 = pneg %p501
      $region54: #{tpu_custom_call.1} parent=5 // pred_check_branch
        %504 = sbr.rel (%p502) target = $region56
      $region55: #{tpu_custom_call.1} parent=5 // pred_region
        %s505 = ssub.s32 %s22, 2
        // Predicated region
        $region57: #{tpu_custom_call.1} parent=55 // pred_check
          %p506 = pneg %p177
        $region58: #{tpu_custom_call.1} parent=55 // pred_check_branch
          %508 = sbr.rel (%p506) target = $region60
        $region59: #{tpu_custom_call.1} parent=55 // pred_region
          %s509 = sand.u32 %s162, 1
          %s510 = scalar_lea.sflag [#allocation4], %s509
          %s511 = sand.u32 %s162, 1
          %s512 = smul.addr %s511, 4
          %s513 = scalar_lea.vmem [#allocation5], %s512
          %515 = dma.done %s510, 64
        $region60: #{tpu_custom_call.1} parent=55 // pred_fallthru
          _
        // Predicated region
        $region61: #{tpu_custom_call.1} parent=55 // pred_check
          %p516 = pneg %p205
        $region62: #{tpu_custom_call.1} parent=55 // pred_check_branch
          %518 = sbr.rel (%p516) target = $region64
        $region63: #{tpu_custom_call.1} parent=55 // pred_region
          %s519 = sand.u32 %s190, 1
          %s520 = scalar_lea.sflag [#allocation7], %s519
          %s521 = sand.u32 %s190, 1
          %s522 = smul.addr %s521, 32
          %s523 = scalar_lea.vmem [#allocation6], %s522
          %525 = dma.done %s520, 512
        $region64: #{tpu_custom_call.1} parent=55 // pred_fallthru
          _
      $region56: #{tpu_custom_call.1} parent=5 // pred_fallthru
        _
    $region6: #{tpu_custom_call.1} parent=1 // loop_footer
      %s26 = sadd.s32 1, %s22
    $region7: #{tpu_custom_call.1} parent=1 // loop_footer_branch
      %21 = sbr.rel target = $region3
    $region8: #{tpu_custom_call.1} parent=1 // loop_exit
      _
    %526 = vsyncpa [#allocation3], 1
    %s527 = scalar_lea.sflag [#allocation3], 1
    %528 = vsyncpa %s527, 1
    %529 = vsyncpa [#allocation4], 1
    %s530 = scalar_lea.sflag [#allocation4], 1
    %531 = vsyncpa %s530, 1
    %532 = vsyncpa [#allocation7], 1
    %s533 = scalar_lea.sflag [#allocation7], 1
    %534 = vsyncpa %s533, 1

</llo_original>
